<compile_context>
chip_gen: v5e
topology: v5e:2x2
jax: 0.10.0
libtpu: 0.0.40
codegen_flags: <defaults>
</compile_context>

<pallas_src>
import jax
import jax.numpy as jnp
from jax.experimental import pallas as pl
from jax.experimental.pallas import tpu as pltpu

KSIZE = 7
PAD = 3


# --------------------------------------------------------------------------
# Kernel
# --------------------------------------------------------------------------
def _cbam_kernel(x_ref, w1_ref, w2_ref, aavg_ref, amax_ref, bsa_ref, out_ref):
    # x_ref:   (NB, C, H*W)  lane-dense tile of NB batch elements
    # w1_ref:  (C, hidden)   transposed 1x1-conv weight of the shared MLP
    # w2_ref:  (hidden, C)   transposed 1x1-conv weight of the shared MLP
    # aavg_ref/amax_ref: (H*W, H*W)  7x7-conv-as-matmul operators
    # bsa_ref: (1,) SMEM     spatial-conv bias
    nb, C, HW = x_ref.shape
    inv_hw = 1.0 / float(HW)
    inv_c = 1.0 / float(C)

    x = x_ref[...].astype(jnp.float32)                   # (NB, C, HW)

    # ---- channel attention: global avg/max pool + fused shared MLP --------
    avg = jnp.sum(x, axis=2) * inv_hw                     # (NB, C)
    mx = jnp.max(x, axis=2)                               # (NB, C)
    v = jnp.concatenate([avg, mx], axis=0)                # (2*NB, C) one MXU pass
    h = jnp.maximum(
        jnp.dot(v, w1_ref[...], preferred_element_type=jnp.float32), 0.0)
    y = jnp.dot(h, w2_ref[...], preferred_element_type=jnp.float32)  # (2*NB, C)
    ca = jax.nn.sigmoid(y[:nb] + y[nb:])                  # (NB, C)

    out1 = x * ca[:, :, None]                             # (NB, C, HW)

    # ---- spatial attention: channel mean/max -> 7x7 conv (MXU) -> sigmoid --
    mean_rows = [jnp.sum(out1[b], axis=0, keepdims=True) * inv_c
                 for b in range(nb)]                       # NB x (1, HW)
    max_rows = [jnp.max(out1[b], axis=0, keepdims=True)
                for b in range(nb)]
    mean_c = jnp.concatenate(mean_rows, axis=0)            # (NB, HW)
    max_c = jnp.concatenate(max_rows, axis=0)              # (NB, HW)

    conv = (jnp.dot(mean_c, aavg_ref[...], preferred_element_type=jnp.float32)
            + jnp.dot(max_c, amax_ref[...], preferred_element_type=jnp.float32)
            + bsa_ref[0])                                  # (NB, HW)
    sa = jax.nn.sigmoid(conv)

    # lane-dense (full 128-lane) store
    out_ref[...] = (out1 * sa[:, None, :]).astype(out_ref.dtype)


# --------------------------------------------------------------------------
# Wrapper helpers
# --------------------------------------------------------------------------
def _conv7x7_as_matmul(w_sa, H, W):
    """Lower the padded KxK conv (2 -> 1 channels) to two (H*W, H*W) matrices.

    conv(cat([mean, max]))[p] == mean_flat @ A[0] + max_flat @ A[1]   (per n)
    Built from the weights only (wrapper-time constant, not per-input work).
    """
    K = w_sa.shape[-1]
    pad = (K - 1) // 2
    hw = H * W
    hi = jnp.arange(H)[:, None, None, None]    # input row
    wi = jnp.arange(W)[None, :, None, None]    # input col
    ho = jnp.arange(H)[None, None, :, None]    # output row
    wo = jnp.arange(W)[None, None, None, :]    # output col
    dh = hi - ho + pad
    dw = wi - wo + pad
    valid = (dh >= 0) & (dh < K) & (dw >= 0) & (dw < K)
    dh = jnp.clip(dh, 0, K - 1)
    dw = jnp.clip(dw, 0, K - 1)
    w = jnp.asarray(w_sa, jnp.float32)[0]                    # (2, K, K)
    a = jnp.where(valid[None], w[:, dh, dw], 0.0)            # (2, H, W, H, W)
    return a.reshape(2, hw, hw)


def _pick_block_batch(n, per_batch_bytes, budget=2 << 20):
    """Largest divisor of n whose tile fits `budget`, keeping >= 2 grid steps
    (when n >= 2) so the parallel batch axis can shard across v7x's 2 cores."""
    best = 1
    for nb in range(1, n + 1):
        if n % nb:
            continue
        if nb * per_batch_bytes > budget:
            break
        if n >= 2 and n // nb < 2:
            continue
        best = nb
    return best


def cbam_pallas(x, w1, w2, w_sa, b_sa):
    N, C, H, W = x.shape
    hidden = w1.shape[0]
    HW = H * W

    x_flat = x.reshape(N, C, HW)
    w1_t = jnp.asarray(w1, jnp.float32).T        # (C, hidden)
    w2_t = jnp.asarray(w2, jnp.float32).T        # (hidden, C)
    a = _conv7x7_as_matmul(w_sa, H, W)           # (2, HW, HW)
    a_avg, a_max = a[0], a[1]
    b_sa = jnp.asarray(b_sa, jnp.float32).reshape(1)

    nb = _pick_block_batch(N, C * HW * x.dtype.itemsize)
    grid = (N // nb,)

    tile_bytes = nb * C * HW * x.dtype.itemsize
    vmem_limit = min(48 << 20, max(32 << 20, 8 * tile_bytes + 2 * HW * HW * 4))

    out_flat = pl.pallas_call(
        _cbam_kernel,
        out_shape=jax.ShapeDtypeStruct((N, C, HW), x.dtype),
        grid=grid,
        in_specs=[
            pl.BlockSpec((nb, C, HW), lambda b: (b, 0, 0)),
            pl.BlockSpec((C, hidden), lambda b: (0, 0)),
            pl.BlockSpec((hidden, C), lambda b: (0, 0)),
            pl.BlockSpec((HW, HW), lambda b: (0, 0)),
            pl.BlockSpec((HW, HW), lambda b: (0, 0)),
            pl.BlockSpec(memory_space=pltpu.MemorySpace.SMEM),
        ],
        out_specs=pl.BlockSpec((nb, C, HW), lambda b: (b, 0, 0)),
        compiler_params=pltpu.CompilerParams(
            dimension_semantics=("parallel",),
            vmem_limit_bytes=vmem_limit),
    )(x_flat, w1_t, w2_t, a_avg, a_max, b_sa)

    return out_flat.reshape(N, C, H, W)


# --------------------------------------------------------------------------
# Pure-JAX reference (mirrors the PyTorch forward, NCHW)
# --------------------------------------------------------------------------
def cbam_ref(x, w1, w2, w_sa, b_sa):
    avg = jnp.mean(x, axis=(2, 3))                          # (N, C)
    mx = jnp.max(x, axis=(2, 3))                            # (N, C)

    def mlp(v):
        h = jnp.maximum(v @ w1.T, 0.0)
        return h @ w2.T

    ca = jax.nn.sigmoid(mlp(avg) + mlp(mx))[:, :, None, None]
    out1 = ca * x
    mean_c = jnp.mean(out1, axis=1, keepdims=True)
    max_c = jnp.max(out1, axis=1, keepdims=True)
    cat = jnp.concatenate([mean_c, max_c], axis=1)          # (N, 2, H, W)
    conv = jax.lax.conv_general_dilated(
        cat, w_sa.reshape(1, 2, KSIZE, KSIZE), (1, 1),
        ((PAD, PAD), (PAD, PAD)),
        dimension_numbers=("NCHW", "OIHW", "NCHW")) + b_sa.reshape(1, 1, 1, 1)
    sa = jax.nn.sigmoid(conv)
    return sa * out1


if __name__ == "__main__":
    key = jax.random.PRNGKey(0)
    kx, k1, k2, k3, k4 = jax.random.split(key, 5)

    N, C, H, W = 2, 32, 16, 16
    ratio = 16
    hidden = C // ratio                                     # = 2

    x = jax.random.normal(kx, (N, C, H, W), jnp.float32)
    # deterministic synthetic weights (shapes as in the module __init__)
    w1 = jax.random.normal(k1, (hidden, C), jnp.float32) * 0.1   # Conv2d(C, C//16, 1, bias=False)
    w2 = jax.random.normal(k2, (C, hidden), jnp.float32) * 0.1   # Conv2d(C//16, C, 1, bias=False)
    w_sa = jax.random.normal(k3, (1, 2, KSIZE, KSIZE), jnp.float32) * 0.1  # Conv2d(2,1,7,pad=3)
    b_sa = jax.random.normal(k4, (1,), jnp.float32) * 0.1

    out = jax.block_until_ready(cbam_pallas(x, w1, w2, w_sa, b_sa))
    with jax.default_matmul_precision("highest"):
        ref = jax.block_until_ready(cbam_ref(x, w1, w2, w_sa, b_sa))

    assert out.shape == x.shape and out.dtype == x.dtype
    max_err = float(jnp.max(jnp.abs(out - ref)))
    # tolerance allows for MXU default matmul precision on the conv-as-matmul
    assert jnp.allclose(out, ref, rtol=5e-3, atol=5e-3), f"max_err={max_err}"
    print("KERNEL_OK")
</pallas_src>

<mosaic_0001>
module attributes {stable_mosaic.version = 11 : i64} {
  func.func @_cbam_kernel(%arg0: i32, %arg1: memref<1x32x256xf32, #tpu.memory_space<vmem>>, %arg2: memref<32x2xf32, #tpu.memory_space<vmem>>, %arg3: memref<2x32xf32, #tpu.memory_space<vmem>>, %arg4: memref<256x256xf32, #tpu.memory_space<vmem>>, %arg5: memref<256x256xf32, #tpu.memory_space<vmem>>, %arg6: memref<1xf32, #tpu.memory_space<smem>>, %arg7: memref<1x32x256xf32, #tpu.memory_space<vmem>>) attributes {dimension_semantics = [#tpu.dimension_semantics<parallel>], iteration_bounds = array<i64: 2>, scalar_prefetch = 0 : i64, scratch_operands = 0 : i64, tpu.core_type = #tpu.core_type<tc>, window_params = [{transform_indices = @transform_0, window_bounds = array<i64: 1, 32, 256>}, {pipeline_mode = #tpu.pipeline_mode<synchronous>, transform_indices = @transform_1, window_bounds = array<i64: 32, 2>}, {pipeline_mode = #tpu.pipeline_mode<synchronous>, transform_indices = @transform_2, window_bounds = array<i64: 2, 32>}, {pipeline_mode = #tpu.pipeline_mode<synchronous>, transform_indices = @transform_3, window_bounds = array<i64: 256, 256>}, {pipeline_mode = #tpu.pipeline_mode<synchronous>, transform_indices = @transform_4, window_bounds = array<i64: 256, 256>}, {transform_indices = @transform_5, window_bounds = array<i64: 1>}, {transform_indices = @transform_6, window_bounds = array<i64: 1, 32, 256>}]} {
    %c0 = arith.constant 0 : index
    %c0_0 = arith.constant 0 : index
    %c0_1 = arith.constant 0 : index
    %0 = vector.load %arg1[%c0, %c0_0, %c0_1] : memref<1x32x256xf32, #tpu.memory_space<vmem>>, vector<1x32x256xf32>
    %cst = arith.constant dense<0.000000e+00> : vector<1x32xf32>
    %1 = vector.multi_reduction <add>, %0, %cst [2] : vector<1x32x256xf32> to vector<1x32xf32>
    %cst_2 = arith.constant 3.906250e-03 : f32
    %2 = vector.broadcast %cst_2 : f32 to vector<1x32xf32>
    %3 = arith.mulf %1, %2 : vector<1x32xf32>
    %cst_3 = arith.constant dense<0xFF800000> : vector<1x32xf32>
    %4 = vector.multi_reduction <maximumf>, %0, %cst_3 [2] : vector<1x32x256xf32> to vector<1x32xf32>
    %5 = tpu.concatenate %3, %4 in 0 : vector<1x32xf32>, vector<1x32xf32> -> vector<2x32xf32>
    %c0_4 = arith.constant 0 : index
    %c0_5 = arith.constant 0 : index
    %6 = vector.load %arg2[%c0_4, %c0_5] : memref<32x2xf32, #tpu.memory_space<vmem>>, vector<32x2xf32>
    %cst_6 = arith.constant dense<0.000000e+00> : vector<2x2xf32>
    %7 = tpu.matmul %5, %6, %cst_6 {dimension_numbers = #tpu.dot_dimension_numbers<[1], [0], [0], [1], [0, 0, 1, 1], [], []>} : vector<2x32xf32>, vector<32x2xf32>, vector<2x2xf32> -> vector<2x2xf32>
    %cst_7 = arith.constant 0.000000e+00 : f32
    %8 = vector.broadcast %cst_7 : f32 to vector<2x2xf32>
    %9 = arith.maximumf %7, %8 : vector<2x2xf32>
    %c0_8 = arith.constant 0 : index
    %c0_9 = arith.constant 0 : index
    %10 = vector.load %arg3[%c0_8, %c0_9] : memref<2x32xf32, #tpu.memory_space<vmem>>, vector<2x32xf32>
    %cst_10 = arith.constant dense<0.000000e+00> : vector<2x32xf32>
    %11 = tpu.matmul %9, %10, %cst_10 {dimension_numbers = #tpu.dot_dimension_numbers<[1], [0], [0], [1], [0, 0, 1, 1], [], []>} : vector<2x2xf32>, vector<2x32xf32>, vector<2x32xf32> -> vector<2x32xf32>
    %12 = vector.extract_strided_slice %11 {offsets = [0, 0], sizes = [1, 32], strides = [1, 1]} : vector<2x32xf32> to vector<1x32xf32>
    %13 = vector.extract_strided_slice %11 {offsets = [1, 0], sizes = [1, 32], strides = [1, 1]} : vector<2x32xf32> to vector<1x32xf32>
    %14 = arith.addf %12, %13 : vector<1x32xf32>
    %15 = arith.negf %14 : vector<1x32xf32>
    %16 = math.exp %15 : vector<1x32xf32>
    %cst_11 = arith.constant 1.000000e+00 : f32
    %17 = vector.broadcast %cst_11 : f32 to vector<1x32xf32>
    %18 = arith.addf %17, %16 : vector<1x32xf32>
    %19 = arith.divf %17, %18 : vector<1x32xf32>
    %20 = vector.shape_cast %19 : vector<1x32xf32> to vector<1x32x1xf32>
    %21 = vector.broadcast %20 : vector<1x32x1xf32> to vector<1x32x256xf32>
    %22 = arith.mulf %0, %21 : vector<1x32x256xf32>
    %23 = vector.shape_cast %22 : vector<1x32x256xf32> to vector<32x256xf32>
    %cst_12 = arith.constant dense<0.000000e+00> : vector<256xf32>
    %24 = vector.multi_reduction <add>, %23, %cst_12 [0] : vector<32x256xf32> to vector<256xf32>
    %25 = vector.shape_cast %24 : vector<256xf32> to vector<1x256xf32>
    %cst_13 = arith.constant 3.125000e-02 : f32
    %26 = vector.broadcast %cst_13 : f32 to vector<1x256xf32>
    %27 = arith.mulf %25, %26 : vector<1x256xf32>
    %28 = vector.shape_cast %22 : vector<1x32x256xf32> to vector<32x256xf32>
    %cst_14 = arith.constant dense<0xFF800000> : vector<256xf32>
    %29 = vector.multi_reduction <maximumf>, %28, %cst_14 [0] : vector<32x256xf32> to vector<256xf32>
    %30 = vector.shape_cast %29 : vector<256xf32> to vector<1x256xf32>
    %c0_15 = arith.constant 0 : index
    %c0_16 = arith.constant 0 : index
    %31 = vector.load %arg4[%c0_15, %c0_16] : memref<256x256xf32, #tpu.memory_space<vmem>>, vector<256x256xf32>
    %cst_17 = arith.constant dense<0.000000e+00> : vector<1x256xf32>
    %32 = tpu.matmul %27, %31, %cst_17 {dimension_numbers = #tpu.dot_dimension_numbers<[1], [0], [0], [1], [0, 0, 1, 1], [], []>} : vector<1x256xf32>, vector<256x256xf32>, vector<1x256xf32> -> vector<1x256xf32>
    %c0_18 = arith.constant 0 : index
    %c0_19 = arith.constant 0 : index
    %33 = vector.load %arg5[%c0_18, %c0_19] : memref<256x256xf32, #tpu.memory_space<vmem>>, vector<256x256xf32>
    %cst_20 = arith.constant dense<0.000000e+00> : vector<1x256xf32>
    %34 = tpu.matmul %30, %33, %cst_20 {dimension_numbers = #tpu.dot_dimension_numbers<[1], [0], [0], [1], [0, 0, 1, 1], [], []>} : vector<1x256xf32>, vector<256x256xf32>, vector<1x256xf32> -> vector<1x256xf32>
    %35 = arith.addf %32, %34 : vector<1x256xf32>
    %c0_21 = arith.constant 0 : index
    %36 = memref.load %arg6[%c0_21] : memref<1xf32, #tpu.memory_space<smem>>
    %37 = vector.broadcast %36 : f32 to vector<1x256xf32>
    %38 = arith.addf %35, %37 : vector<1x256xf32>
    %39 = arith.negf %38 : vector<1x256xf32>
    %40 = math.exp %39 : vector<1x256xf32>
    %cst_22 = arith.constant 1.000000e+00 : f32
    %41 = vector.broadcast %cst_22 : f32 to vector<1x256xf32>
    %42 = arith.addf %41, %40 : vector<1x256xf32>
    %43 = arith.divf %41, %42 : vector<1x256xf32>
    %44 = vector.shape_cast %43 : vector<1x256xf32> to vector<1x1x256xf32>
    %45 = vector.broadcast %44 : vector<1x1x256xf32> to vector<1x32x256xf32>
    %46 = arith.mulf %22, %45 : vector<1x32x256xf32>
    %c0_23 = arith.constant 0 : index
    %c0_24 = arith.constant 0 : index
    %c0_25 = arith.constant 0 : index
    %47 = vector.load %arg7[%c0_23, %c0_24, %c0_25] : memref<1x32x256xf32, #tpu.memory_space<vmem>>, vector<1x32x256xf32>
    tpu.vector_store %arg7[%c0_23, %c0_24, %c0_25], %46 {strides = array<i32>} : memref<1x32x256xf32, #tpu.memory_space<vmem>>, vector<1x32x256xf32>,
    return
  }
  func.func @transform_0(%arg0: i32) -> (i32, i32, i32) {
    %c0_i32 = arith.constant 0 : i32
    %c0_i32_0 = arith.constant 0 : i32
    %c0_i32_1 = arith.constant 0 : i32
    return %arg0, %c0_i32, %c0_i32_0 : i32, i32, i32
  }
  func.func @transform_1(%arg0: i32) -> (i32, i32) {
    %c0_i32 = arith.constant 0 : i32
    %c0_i32_0 = arith.constant 0 : i32
    %c0_i32_1 = arith.constant 0 : i32
    return %c0_i32, %c0_i32_0 : i32, i32
  }
  func.func @transform_2(%arg0: i32) -> (i32, i32) {
    %c0_i32 = arith.constant 0 : i32
    %c0_i32_0 = arith.constant 0 : i32
    %c0_i32_1 = arith.constant 0 : i32
    return %c0_i32, %c0_i32_0 : i32, i32
  }
  func.func @transform_3(%arg0: i32) -> (i32, i32) {
    %c0_i32 = arith.constant 0 : i32
    %c0_i32_0 = arith.constant 0 : i32
    %c0_i32_1 = arith.constant 0 : i32
    return %c0_i32, %c0_i32_0 : i32, i32
  }
  func.func @transform_4(%arg0: i32) -> (i32, i32) {
    %c0_i32 = arith.constant 0 : i32
    %c0_i32_0 = arith.constant 0 : i32
    %c0_i32_1 = arith.constant 0 : i32
    return %c0_i32, %c0_i32_0 : i32, i32
  }
  func.func @transform_5(%arg0: i32) -> i32 {
    %c0_i32 = arith.constant 0 : i32
    %c0_i32_0 = arith.constant 0 : i32
    return %c0_i32 : i32
  }
  func.func @transform_6(%arg0: i32) -> (i32, i32, i32) {
    %c0_i32 = arith.constant 0 : i32
    %c0_i32_0 = arith.constant 0 : i32
    %c0_i32_1 = arith.constant 0 : i32
    return %arg0, %c0_i32, %c0_i32_0 : i32, i32, i32
  }
}

</mosaic_0001>

<llo_original>
// kernel: tpu_custom_call.1
$region0: #{tpu_custom_call.1}
  #allocation0 [shape = 'u32[]', space=smem, size = 0x4, offset = 0x4, fixed_abs, tag = 'smem constant byte address 0x4 - core index']
  #allocation1 [shape = 'u32[72,128]{1,0:T(1,128)}', space=vmem, size = 0x9000, scoped, tag = 'internal scratch']
  #allocation2 [shape = 'f32[1]{0:T(128)S(6)}', space=smem, size = 0x200, scoped, tag = 'scoped memory for tpu_custom_call.1']
  %s0 = inlined_call_operand.hbm [shape: f32[2,32,256], index: 0, kind: input, shape index: {}]
  %s1 = inlined_call_operand.vmem [shape: f32[32,2], index: 1, kind: input, shape index: {}]
  %s2 = inlined_call_operand.vmem [shape: f32[2,32], index: 2, kind: input, shape index: {}]
  %s3 = inlined_call_operand.hbm [shape: f32[256,256], index: 3, kind: input, shape index: {}]
  %s4 = inlined_call_operand.hbm [shape: f32[256,256], index: 4, kind: input, shape index: {}]
  %s5 = inlined_call_operand.<no memory space> [shape: f32[1], index: 5, kind: input, shape index: {}]
  %s6 = inlined_call_operand.hbm [shape: f32[2,32,256], index: 6, kind: output, shape index: {}]
  %s7 = sld [smem:[#allocation0]]
  $region69: #{tpu_custom_call.1} parent=0
    _
  %s9 = ssub.s32 1, %s7
  %s10 = scalar_select 0, %s9, %s7
  %11 = sst [smem:[#allocation2]] %s5
  $region1: #{tpu_custom_call.1} parent=0
    #allocation3 [shape = 'u8[65536]{0}', space=vmem, size = 0x10000, scoped, tag = 'input window, operand 0']
    #allocation4 [shape = 's32[2]{0}', space=sflag, size = 0x8, scoped, tag = 'scoped memory for tpu_custom_call.1']
    #allocation5 [shape = 's32[2]{0}', space=sflag, size = 0x8, scoped, tag = 'scoped memory for tpu_custom_call.1']
    #allocation6 [shape = 'u8[262144]{0}', space=vmem, size = 0x40000, scoped, tag = 'input window, operand 3, single buffered']
    #allocation7 [shape = 's32[1]{0}', space=sflag, size = 0x4, scoped, tag = 'scoped memory for tpu_custom_call.1']
    #allocation8 [shape = 'u8[262144]{0}', space=vmem, size = 0x40000, scoped, tag = 'input window, operand 4, single buffered']
    #allocation9 [shape = 'u8[65536]{0}', space=vmem, size = 0x10000, scoped, tag = 'output window, operand 0']
    %12 = vsyncpa [#allocation4], 0
    %s13 = scalar_lea.sflag [#allocation4], 1
    %14 = vsyncpa %s13, 0
    %15 = vsyncpa [#allocation7], 0
    %16 = vsyncpa [#allocation5], 0
    %s17 = scalar_lea.sflag [#allocation5], 1
    %18 = vsyncpa %s17, 0
    loop: start=0, step=1, limit=4
    $region2: #{tpu_custom_call.1} parent=1 // loop_pre_header
      _
    $region3: #{tpu_custom_call.1} parent=1 // loop_header
      %s20 = sphi 0, %s24
      %p21 = scmp.ge.s32.totalorder %s20, 4
      %s30 = sphi 0, %s32
      %s33 = sphi 0, %s30
      %s34 = sphi 0, %s33
      %s50 = sphi 0, %s34
      %s54 = sphi 0, %s54
      %s56 = sphi 0, %s54
      %s57 = sphi 0, %s56
      %s71 = sphi 0, %s57
      %s75 = sphi 0, %s75
      %s77 = sphi 0, %s75
      %s78 = sphi 0, %s77
      %s92 = sphi 0, %s78
      %s96 = sphi 0, %s96
      %s98 = sphi 0, %s96
      %s99 = sphi 0, %s98
      %s113 = sphi 0, %s99
      %s117 = sphi 0, %s117
      %s119 = sphi 0, %s117
      %s120 = sphi 0, %s119
      %s134 = sphi 0, %s120
      %s138 = sphi 0, %s138
      %s140 = sphi 0, %s138
      %s141 = sphi 0, %s140
      %s155 = sphi 0, %s141
      %s161 = sphi 0, %s163
      %s164 = sphi 0, %s161
      %s165 = sphi 0, %s164
      %s181 = sphi 0, %s165
    $region4: #{tpu_custom_call.1} parent=1 // loop_header_branch
      %23 = sbr.rel (%p21) target = $region8
    $region5: #{tpu_custom_call.1} parent=1 // loop_body
      %s25 = ssub.s32 %s20, 1
      %s26 = ssub.s32 %s20, 2
      %s27 = sadd.s32 %s20, 1
      %s28 = ssub.s32 %s20, %s27
      %p29 = scmp.eq.s32.totalorder %s28, 0
      %s31 = sadd.s32 %s30, 1
      %s32 = scalar_select %p29, %s30, %s31
      %p35 = pneg %p29
      %p36 = scmp.eq.s32.totalorder %s20, 1
      %p37 = por %p35, %p36
      %p38 = scmp.ne.s32.totalorder %s30, %s33
      %p39 = scmp.eq.s32.totalorder %s20, 0
      %p40 = por %p38, %p39
      %p41 = scmp.ne.s32.totalorder %s30, %s33
      %p42 = scmp.eq.s32.totalorder %s25, 1
      %p43 = por %p41, %p42
      %p44 = scmp.ne.s32.totalorder %s33, %s34
      %p45 = scmp.eq.s32.totalorder %s25, 0
      %p46 = por %p44, %p45
      %p47 = scmp.ne.s32.totalorder %s33, %s34
      %p48 = scmp.eq.s32.totalorder %s26, 1
      %p49 = por %p47, %p48
      %p51 = scmp.ne.s32.totalorder %s34, %s50
      %p52 = scmp.eq.s32.totalorder %s26, 0
      %p53 = por %p51, %p52
      %s55 = sadd.s32 %s54, 1
      %p58 = scmp.eq.s32.totalorder %s20, 1
      %p59 = scmp.ne.s32.totalorder %s54, %s56
      %p60 = scmp.eq.s32.totalorder %s20, 0
      %p61 = por %p59, %p60
      %p62 = scmp.ne.s32.totalorder %s54, %s56
      %p63 = scmp.eq.s32.totalorder %s25, 1
      %p64 = por %p62, %p63
      %p65 = scmp.ne.s32.totalorder %s56, %s57
      %p66 = scmp.eq.s32.totalorder %s25, 0
      %p67 = por %p65, %p66
      %p68 = scmp.ne.s32.totalorder %s56, %s57
      %p69 = scmp.eq.s32.totalorder %s26, 1
      %p70 = por %p68, %p69
      %p72 = scmp.ne.s32.totalorder %s57, %s71
      %p73 = scmp.eq.s32.totalorder %s26, 0
      %p74 = por %p72, %p73
      %s76 = sadd.s32 %s75, 1
      %p79 = scmp.eq.s32.totalorder %s20, 1
      %p80 = scmp.ne.s32.totalorder %s75, %s77
      %p81 = scmp.eq.s32.totalorder %s20, 0
      %p82 = por %p80, %p81
      %p83 = scmp.ne.s32.totalorder %s75, %s77
      %p84 = scmp.eq.s32.totalorder %s25, 1
      %p85 = por %p83, %p84
      %p86 = scmp.ne.s32.totalorder %s77, %s78
      %p87 = scmp.eq.s32.totalorder %s25, 0
      %p88 = por %p86, %p87
      %p89 = scmp.ne.s32.totalorder %s77, %s78
      %p90 = scmp.eq.s32.totalorder %s26, 1
      %p91 = por %p89, %p90
      %p93 = scmp.ne.s32.totalorder %s78, %s92
      %p94 = scmp.eq.s32.totalorder %s26, 0
      %p95 = por %p93, %p94
      %s97 = sadd.s32 %s96, 1
      %p100 = scmp.eq.s32.totalorder %s20, 1
      %p101 = scmp.ne.s32.totalorder %s96, %s98
      %p102 = scmp.eq.s32.totalorder %s20, 0
      %p103 = por %p101, %p102
      %p104 = scmp.ne.s32.totalorder %s96, %s98
      %p105 = scmp.eq.s32.totalorder %s25, 1
      %p106 = por %p104, %p105
      %p107 = scmp.ne.s32.totalorder %s98, %s99
      %p108 = scmp.eq.s32.totalorder %s25, 0
      %p109 = por %p107, %p108
      %p110 = scmp.ne.s32.totalorder %s98, %s99
      %p111 = scmp.eq.s32.totalorder %s26, 1
      %p112 = por %p110, %p111
      %p114 = scmp.ne.s32.totalorder %s99, %s113
      %p115 = scmp.eq.s32.totalorder %s26, 0
      %p116 = por %p114, %p115
      %s118 = sadd.s32 %s117, 1
      %p121 = scmp.eq.s32.totalorder %s20, 1
      %p122 = scmp.ne.s32.totalorder %s117, %s119
      %p123 = scmp.eq.s32.totalorder %s20, 0
      %p124 = por %p122, %p123
      %p125 = scmp.ne.s32.totalorder %s117, %s119
      %p126 = scmp.eq.s32.totalorder %s25, 1
      %p127 = por %p125, %p126
      %p128 = scmp.ne.s32.totalorder %s119, %s120
      %p129 = scmp.eq.s32.totalorder %s25, 0
      %p130 = por %p128, %p129
      %p131 = scmp.ne.s32.totalorder %s119, %s120
      %p132 = scmp.eq.s32.totalorder %s26, 1
      %p133 = por %p131, %p132
      %p135 = scmp.ne.s32.totalorder %s120, %s134
      %p136 = scmp.eq.s32.totalorder %s26, 0
      %p137 = por %p135, %p136
      %s139 = sadd.s32 %s138, 1
      %p142 = scmp.eq.s32.totalorder %s20, 1
      %p143 = scmp.ne.s32.totalorder %s138, %s140
      %p144 = scmp.eq.s32.totalorder %s20, 0
      %p145 = por %p143, %p144
      %p146 = scmp.ne.s32.totalorder %s138, %s140
      %p147 = scmp.eq.s32.totalorder %s25, 1
      %p148 = por %p146, %p147
      %p149 = scmp.ne.s32.totalorder %s140, %s141
      %p150 = scmp.eq.s32.totalorder %s25, 0
      %p151 = por %p149, %p150
      %p152 = scmp.ne.s32.totalorder %s140, %s141
      %p153 = scmp.eq.s32.totalorder %s26, 1
      %p154 = por %p152, %p153
      %p156 = scmp.ne.s32.totalorder %s141, %s155
      %p157 = scmp.eq.s32.totalorder %s26, 0
      %p158 = por %p156, %p157
      %s159 = ssub.s32 %s20, %s27
      %p160 = scmp.eq.s32.totalorder %s159, 0
      %s162 = sadd.s32 %s161, 1
      %s163 = scalar_select %p160, %s161, %s162
      %p166 = pneg %p160
      %p167 = scmp.eq.s32.totalorder %s20, 1
      %p168 = por %p166, %p167
      %p169 = scmp.ne.s32.totalorder %s161, %s164
      %p170 = scmp.eq.s32.totalorder %s20, 0
      %p171 = por %p169, %p170
      %p172 = scmp.ne.s32.totalorder %s161, %s164
      %p173 = scmp.eq.s32.totalorder %s25, 1
      %p174 = por %p172, %p173
      %p175 = scmp.ne.s32.totalorder %s164, %s165
      %p176 = scmp.eq.s32.totalorder %s25, 0
      %p177 = por %p175, %p176
      %p178 = scmp.ne.s32.totalorder %s164, %s165
      %p179 = scmp.eq.s32.totalorder %s26, 1
      %p180 = por %p178, %p179
      %p182 = scmp.ne.s32.totalorder %s165, %s181
      %p183 = scmp.eq.s32.totalorder %s26, 0
      %p184 = por %p182, %p183
      %p185 = scmp.le.s32.totalorder 1, %s20
      %p186 = scmp.lt.s32.totalorder %s20, 3
      %p187 = pnand %p185, %p186
      %p188 = pneg %p187
      // Predicated region
      $region9: #{tpu_custom_call.1} parent=5 // pred_check
        _
      $region10: #{tpu_custom_call.1} parent=5 // pred_check_branch
        %190 = sbr.rel (%p187) target = $region12
      $region11: #{tpu_custom_call.1} parent=5 // pred_region
        %s191 = ssub.s32 %s20, 1
        // Predicated region
        $region13: #{tpu_custom_call.1} parent=11 // pred_check
          %p192 = pneg %p67
        $region14: #{tpu_custom_call.1} parent=11 // pred_check_branch
          %194 = sbr.rel (%p192) target = $region16
        $region15: #{tpu_custom_call.1} parent=11 // pred_region
          _
        $region16: #{tpu_custom_call.1} parent=11 // pred_fallthru
          _
        // Predicated region
        $region17: #{tpu_custom_call.1} parent=11 // pred_check
          %p195 = pneg %p88
        $region18: #{tpu_custom_call.1} parent=11 // pred_check_branch
          %197 = sbr.rel (%p195) target = $region20
        $region19: #{tpu_custom_call.1} parent=11 // pred_region
          _
        $region20: #{tpu_custom_call.1} parent=11 // pred_fallthru
          _
        // Predicated region
        $region21: #{tpu_custom_call.1} parent=11 // pred_check
          %p198 = pneg %p109
        $region22: #{tpu_custom_call.1} parent=11 // pred_check_branch
          %200 = sbr.rel (%p198) target = $region24
        $region23: #{tpu_custom_call.1} parent=11 // pred_region
          %202 = vsyncadd [#allocation7], 0
          %s203 = sshll.u32 %s3, 4
          %s204 = int_to_ptr.hbm [resolvable:$true] %s203
          %s205 = sshll.u32 [#allocation6], 4
          %s206 = int_to_ptr.vmem [resolvable:$true] %s205
          %211 = dma.hbm_to_vmem [thread:$0]  %s204, 8192, %s206, [#allocation7], 256, 256, 16
        $region24: #{tpu_custom_call.1} parent=11 // pred_fallthru
          _
        // Predicated region
        $region25: #{tpu_custom_call.1} parent=11 // pred_check
          %p212 = pneg %p130
        $region26: #{tpu_custom_call.1} parent=11 // pred_check_branch
          %214 = sbr.rel (%p212) target = $region28
        $region27: #{tpu_custom_call.1} parent=11 // pred_region
          %216 = vsyncadd [#allocation7], 0
          %s217 = sshll.u32 %s4, 4
          %s218 = int_to_ptr.hbm [resolvable:$true] %s217
          %s219 = sshll.u32 [#allocation8], 4
          %s220 = int_to_ptr.vmem [resolvable:$true] %s219
          %225 = dma.hbm_to_vmem [thread:$0]  %s218, 8192, %s220, [#allocation7], 256, 256, 16
        $region28: #{tpu_custom_call.1} parent=11 // pred_fallthru
          _
        // Predicated region
        $region29: #{tpu_custom_call.1} parent=11 // pred_check
          %p226 = pneg %p151
        $region30: #{tpu_custom_call.1} parent=11 // pred_check_branch
          %228 = sbr.rel (%p226) target = $region32
        $region31: #{tpu_custom_call.1} parent=11 // pred_region
          _
        $region32: #{tpu_custom_call.1} parent=11 // pred_fallthru
          _
      $region12: #{tpu_custom_call.1} parent=5 // pred_fallthru
        _
      %p229 = scmp.lt.s32.totalorder %s20, 2
      // Predicated region
      $region33: #{tpu_custom_call.1} parent=5 // pred_check
        %p230 = pneg %p229
      $region34: #{tpu_custom_call.1} parent=5 // pred_check_branch
        %232 = sbr.rel (%p230) target = $region36
      $region35: #{tpu_custom_call.1} parent=5 // pred_region
        // Predicated region
        $region37: #{tpu_custom_call.1} parent=35 // pred_check
          %p233 = pneg %p40
        $region38: #{tpu_custom_call.1} parent=35 // pred_check_branch
          %235 = sbr.rel (%p233) target = $region40
        $region39: #{tpu_custom_call.1} parent=35 // pred_region
          %s236 = sand.u32 %s30, 1
          %s237 = scalar_lea.sflag [#allocation4], %s236
          %s238 = sand.u32 %s30, 1
          %s239 = smul.addr %s238, 64
          %s240 = scalar_lea.vmem [#allocation3], %s239
          %242 = vsyncadd %s237, 0
          %s243 = smul.addr %s20, 8
          %s244 = smul.addr %s243, 8
          %s245 = scalar_lea.hbm %s0, %s244
          %s246 = sshll.u32 %s245, 4
          %s247 = int_to_ptr.hbm [resolvable:$true] %s246
          %s248 = sshll.u32 %s240, 4
          %s249 = int_to_ptr.vmem [resolvable:$true] %s248
          %254 = dma.hbm_to_vmem [thread:$0]  %s247, 1024, %s249, %s237, 256, 256, 16
        $region40: #{tpu_custom_call.1} parent=35 // pred_fallthru
          _
      $region36: #{tpu_custom_call.1} parent=5 // pred_fallthru
        _
      %p255 = scmp.le.s32.totalorder 1, %s20
      %p256 = scmp.lt.s32.totalorder %s20, 3
      %p257 = pnand %p255, %p256
      %p258 = pneg %p257
      // Predicated region
      $region41: #{tpu_custom_call.1} parent=5 // pred_check
        _
      $region42: #{tpu_custom_call.1} parent=5 // pred_check_branch
        %260 = sbr.rel (%p257) target = $region44
      $region43: #{tpu_custom_call.1} parent=5 // pred_region
        %s261 = ssub.s32 %s20, 1
        %s262 = sand.u32 %s33, 1
        %s263 = scalar_lea.sflag [#allocation4], %s262
        %s264 = sand.u32 %s33, 1
        %s265 = smul.addr %s264, 64
        %s266 = scalar_lea.vmem [#allocation3], %s265
        // Predicated region
        $region45: #{tpu_custom_call.1} parent=43 // pred_check
          %p267 = pneg %p46
        $region46: #{tpu_custom_call.1} parent=43 // pred_check_branch
          %269 = sbr.rel (%p267) target = $region48
        $region47: #{tpu_custom_call.1} parent=43 // pred_region
          %271 = dma.done %s263, 1024
        $region48: #{tpu_custom_call.1} parent=43 // pred_fallthru
          _
        // Predicated region
        $region49: #{tpu_custom_call.1} parent=43 // pred_check
          %p272 = pneg %p109
        $region50: #{tpu_custom_call.1} parent=43 // pred_check_branch
          %274 = sbr.rel (%p272) target = $region52
        $region51: #{tpu_custom_call.1} parent=43 // pred_region
          %276 = dma.done [#allocation7], 8192
        $region52: #{tpu_custom_call.1} parent=43 // pred_fallthru
          _
        // Predicated region
        $region53: #{tpu_custom_call.1} parent=43 // pred_check
          %p277 = pneg %p130
        $region54: #{tpu_custom_call.1} parent=43 // pred_check_branch
          %279 = sbr.rel (%p277) target = $region56
        $region55: #{tpu_custom_call.1} parent=43 // pred_region
          %281 = dma.done [#allocation7], 8192
        $region56: #{tpu_custom_call.1} parent=43 // pred_fallthru
          _
        %s282 = sand.u32 %s33, 1
        %s283 = scalar_lea.sflag [#allocation4], %s282
        %s284 = sand.u32 %s33, 1
        %s285 = smul.addr %s284, 64
        %s286 = scalar_lea.vmem [#allocation3], %s285
        %p287 = pneg %p46
        %p288 = pneg %p43
        %p289 = pneg %p67
        %p290 = pneg %p64
        %p291 = pneg %p88
        %p292 = pneg %p85
        %p293 = pneg %p109
        %p294 = pneg %p106
        %p295 = pneg %p130
        %p296 = pneg %p127
        %p297 = pneg %p151
        %p298 = pneg %p148
        %p299 = pneg %p177
        %p300 = pneg %p174
        %s301 = sand.u32 %s164, 1
        %s302 = scalar_lea.sflag [#allocation5], %s301
        %s303 = sand.u32 %s164, 1
        %s304 = smul.addr %s303, 64
        %s305 = scalar_lea.vmem [#allocation9], %s304
        %v306 = vld [vmem:[%s266] sm:$0xff]
        %v307 = vld [vmem:[%s266 + $0x8] sm:$0xff]
        %v308 = vld [vmem:[%s266 + $0x10] sm:$0xff]
        %v309 = vld [vmem:[%s266 + $0x18] sm:$0xff]
        %v310 = vld [vmem:[%s266 + $0x20] sm:$0xff]
        %v311 = vld [vmem:[%s266 + $0x28] sm:$0xff]
        %v312 = vld [vmem:[%s266 + $0x30] sm:$0xff]
        %v313 = vld [vmem:[%s266 + $0x38] sm:$0xff]
        %v314 = vadd.f32 %v306, %v307
        %315 = vadd.xlane.f32.xlu0 %v314
        %v316 = vpop.xlane.xlu0 %315
        %v317 = vadd.f32 %v308, %v309
        %318 = vadd.xlane.f32.xlu0 %v317
        %v319 = vpop.xlane.xlu0 %318
        %v320 = vadd.f32 %v310, %v311
        %321 = vadd.xlane.f32.xlu0 %v320
        %v322 = vpop.xlane.xlu0 %321
        %v323 = vadd.f32 %v312, %v313
        %324 = vadd.xlane.f32.xlu0 %v323
        %v325 = vpop.xlane.xlu0 %324
        %v326 = vmul.f32 %v316, 0.00390625
        %v327 = vmul.f32 %v319, 0.00390625
        %v328 = vmul.f32 %v322, 0.00390625
        %v329 = vmul.f32 %v325, 0.00390625
        %v330 = vmax.f32 %v306, %v307
        %331 = vmax.xlane.f32.xlu0 %v330
        %v332 = vpop.xlane.xlu0 %331
        %v333 = vmax.f32 %v308, %v309
        %334 = vmax.xlane.f32.xlu0 %v333
        %v335 = vpop.xlane.xlu0 %334
        %v336 = vmax.f32 %v310, %v311
        %337 = vmax.xlane.f32.xlu0 %v336
        %v338 = vpop.xlane.xlu0 %337
        %v339 = vmax.f32 %v312, %v313
        %340 = vmax.xlane.f32.xlu0 %v339
        %v341 = vpop.xlane.xlu0 %340
        %v346 = vlaneseq
        %v347 = vand.u32 %v346, 127
        %v348 = vperm.slane %v326, %v347
        %v349 = vadd.s32 %v347, 4294967288
        %v350 = vperm.slane %v327, %v349
        %vm351 = vcmask 130112
        %v352 = vsel %vm351, %v350, %v348
        %v353 = vadd.s32 %v347, 4294967280
        %v354 = vperm.slane %v328, %v353
        %vm355 = vcmask 195712
        %v356 = vsel %vm355, %v354, %v352
        %v357 = vadd.s32 %v347, 4294967272
        %v358 = vperm.slane %v329, %v357
        %vm359 = vcmask 261312
        %v360 = vsel %vm359, %v358, %v356
        %v366 = vperm.slane %v332, %v347
        %v367 = vperm.slane %v335, %v349
        %v368 = vsel %vm351, %v367, %v366
        %v369 = vperm.slane %v338, %v353
        %v370 = vsel %vm355, %v369, %v368
        %v371 = vperm.slane %v341, %v357
        %v372 = vsel %vm359, %v371, %v370
        %vm374 = vcmask 1040384
        %v375 = vsel %vm374, %v360, %v372
        %v376 = vld [vmem:[%s1] sm:$0xff]
        %v377 = vld [vmem:[%s1 + $0x8] sm:$0xff]
        %v378 = vld [vmem:[%s1 + $0x10] sm:$0xff]
        %v379 = vld [vmem:[%s1 + $0x18] sm:$0xff]
        %vm380 = vcmask 261120
        %v382 = vsel %vm380, %v375, 0
        %384 = vmatpush.msra.mxu0 0.0
        %385 = vmatpush.msra.mxu0 0.0
        %386 = vmatpush.msra.mxu0 0.0
        %387 = vmatpush.msra.mxu0 0.0
        %388 = vmatpush.msra.mxu0 0.0
        %389 = vmatpush.msra.mxu0 0.0
        %390 = vmatpush.msra.mxu0 0.0
        %391 = vmatpush.msra.mxu0 0.0
        %392 = vmatpush.msra.mxu0 0.0
        %393 = vmatpush.msra.mxu0 0.0
        %394 = vmatpush.msra.mxu0 0.0
        %395 = vmatpush.msra.mxu0 0.0
        %396 = vmatpush.msra.mxu0 %v379
        %397 = vmatpush.msra.mxu0 %v378
        %398 = vmatpush.msra.mxu0 %v377
        %399 = vmatpush.msra.mxu0 %v376
        %400 = vmatmul.f32.gmra.mxu0 %v382
        %v401 = vpop.f32.mrf.mxu0
        %v402 = vadd.f32 0.0, %v401
        %403 = vdwg.mxu0
        %v404 = vmax.f32 %v402, 0.0
        %v405 = vld [vmem:[%s2] sm:$0x3]
        %vm406 = vcmask 15360
        %v408 = vsel %vm406, %v404, 0
        %vm410 = vcmask 1041408
        %v412 = vsel %vm410, %v405, 0
        %414 = vmatpush.msra.mxu0 0.0
        %415 = vmatpush.msra.mxu0 0.0
        %416 = vmatpush.msra.mxu0 0.0
        %417 = vmatpush.msra.mxu0 0.0
        %418 = vmatpush.msra.mxu0 0.0
        %419 = vmatpush.msra.mxu0 0.0
        %420 = vmatpush.msra.mxu0 0.0
        %421 = vmatpush.msra.mxu0 0.0
        %422 = vmatpush.msra.mxu0 0.0
        %423 = vmatpush.msra.mxu0 0.0
        %424 = vmatpush.msra.mxu0 0.0
        %425 = vmatpush.msra.mxu0 0.0
        %426 = vmatpush.msra.mxu0 0.0
        %427 = vmatpush.msra.mxu0 0.0
        %428 = vmatpush.msra.mxu0 0.0
        %429 = vmatpush.msra.mxu0 %v412
        %430 = vmatmul.f32.gmra.mxu0 %v408
        %v431 = vpop.f32.mrf.mxu0
        %v432 = vadd.f32 0.0, %v431
        %433 = vdwg.mxu0
        %v435 = vrot.slane %v432, 1
        %v437 = vadd.f32 %v432, %v435
        %v438 = vxor.u32 %v437, 2147483648
        %v439 = vmul.f32 %v438, 1.442695
        %v440 = vpow.pop %v439
        %v441 = vadd.f32 %v440, 1.0
        %v442 = vrcp.pop %v441
        %v443 = vmul.f32 %v441, %v442
        %v444 = vsub.f32 1.0, %v443
        %v445 = vmul.f32 %v442, %v444
        %v446 = vadd.f32 %v442, %v445
        %vm447 = vweird.f32 %v441
        %vm448 = vweird.f32 %v442
        %vm449 = vmor %vm447, %vm448
        %v450 = vsel %vm449, %v442, %v446
        %v451 = vand.u32 2147483647, %v441
        %vm452 = vcmp.eq.f32.partialorder %v451, 8.507059e+37
        %v453 = vand.u32 %v441, 2147483648
        %v454 = vor.u32 1.1754944e-38, %v453
        %v455 = vsel %vm452, %v454, %v450
        %v456 = vmul.f32 1.0, %v455
        %v457 = vperm.slane %v456, 0
        %v458 = vlaneseq
        %v459 = vshrl.u32 %v458, 7
        %461 = vset.pattern.permute.xlu0 %v459
        %462 = vperm.xlu0 %461, %v457
        %v463 = vpop.permute.xlu0 %462
        %v464 = vlaneseq
        %v465 = vshrl.u32 %v464, 7
        %v466 = vadd.s32 %v465, 8
        %467 = vset.pattern.permute.xlu0 %v466
        %468 = vperm.xlu0 %467, %v457
        %v469 = vpop.permute.xlu0 %468
        %v470 = vlaneseq
        %v471 = vshrl.u32 %v470, 7
        %v472 = vadd.s32 %v471, 16
        %473 = vset.pattern.permute.xlu0 %v472
        %474 = vperm.xlu0 %473, %v457
        %v475 = vpop.permute.xlu0 %474
        %v476 = vlaneseq
        %v477 = vshrl.u32 %v476, 7
        %v478 = vadd.s32 %v477, 24
        %479 = vset.pattern.permute.xlu0 %v478
        %480 = vperm.xlu0 %479, %v457
        %v481 = vpop.permute.xlu0 %480
        %v482 = vmul.f32 %v306, %v463
        %v483 = vmul.f32 %v307, %v463
        %v484 = vmul.f32 %v308, %v469
        %v485 = vmul.f32 %v309, %v469
        %v486 = vmul.f32 %v310, %v475
        %v487 = vmul.f32 %v311, %v475
        %v488 = vmul.f32 %v312, %v481
        %v489 = vmul.f32 %v313, %v481
        %v490 = vadd.f32 %v482, %v484
        %v491 = vadd.f32 %v490, %v486
        %v492 = vadd.f32 %v491, %v488
        %v493 = vrot.slane %v492, 4
        %v494 = vadd.f32 %v492, %v493
        %v495 = vrot.slane %v494, 2
        %v496 = vadd.f32 %v494, %v495
        %v497 = vrot.slane %v496, 1
        %v498 = vadd.f32 %v496, %v497
        %v499 = vadd.f32 %v483, %v485
        %v500 = vadd.f32 %v499, %v487
        %v501 = vadd.f32 %v500, %v489
        %v502 = vrot.slane %v501, 4
        %v503 = vadd.f32 %v501, %v502
        %v504 = vrot.slane %v503, 2
        %v505 = vadd.f32 %v503, %v504
        %v506 = vrot.slane %v505, 1
        %v507 = vadd.f32 %v505, %v506
        %v508 = vmul.f32 %v498, 0.03125
        %v509 = vmul.f32 %v507, 0.03125
        %v510 = vmax.f32 %v482, %v486
        %v511 = vmax.f32 %v484, %v488
        %v512 = vmax.f32 %v510, %v511
        %v513 = vrot.slane %v512, 4
        %v514 = vmax.f32 %v512, %v513
        %v515 = vrot.slane %v514, 2
        %v516 = vmax.f32 %v514, %v515
        %v517 = vrot.slane %v516, 1
        %v518 = vmax.f32 %v516, %v517
        %v519 = vmax.f32 %v483, %v487
        %v520 = vmax.f32 %v485, %v489
        %v521 = vmax.f32 %v519, %v520
        %v522 = vrot.slane %v521, 4
        %v523 = vmax.f32 %v521, %v522
        %v524 = vrot.slane %v523, 2
        %v525 = vmax.f32 %v523, %v524
        %v526 = vrot.slane %v525, 1
        %v527 = vmax.f32 %v525, %v526
        %v528 = vld [vmem:[#allocation6] sm:$0xff]
        %v529 = vld [vmem:[#allocation6 + $0x8] sm:$0xff]
        %v530 = vld [vmem:[#allocation6 + $0x10] sm:$0xff]
        %v531 = vld [vmem:[#allocation6 + $0x18] sm:$0xff]
        %v532 = vld [vmem:[#allocation6 + $0x20] sm:$0xff]
        %v533 = vld [vmem:[#allocation6 + $0x28] sm:$0xff]
        %v534 = vld [vmem:[#allocation6 + $0x30] sm:$0xff]
        %v535 = vld [vmem:[#allocation6 + $0x38] sm:$0xff]
        %v536 = vld [vmem:[#allocation6 + $0x40] sm:$0xff]
        %v537 = vld [vmem:[#allocation6 + $0x48] sm:$0xff]
        %v538 = vld [vmem:[#allocation6 + $0x50] sm:$0xff]
        %v539 = vld [vmem:[#allocation6 + $0x58] sm:$0xff]
        %v540 = vld [vmem:[#allocation6 + $0x60] sm:$0xff]
        %v541 = vld [vmem:[#allocation6 + $0x68] sm:$0xff]
        %v542 = vld [vmem:[#allocation6 + $0x70] sm:$0xff]
        %v543 = vld [vmem:[#allocation6 + $0x78] sm:$0xff]
        %v544 = vld [vmem:[#allocation6 + $0x80] sm:$0xff]
        %v545 = vld [vmem:[#allocation6 + $0x88] sm:$0xff]
        %v546 = vld [vmem:[#allocation6 + $0x90] sm:$0xff]
        %v547 = vld [vmem:[#allocation6 + $0x98] sm:$0xff]
        %v548 = vld [vmem:[#allocation6 + $0xa0] sm:$0xff]
        %v549 = vld [vmem:[#allocation6 + $0xa8] sm:$0xff]
        %v550 = vld [vmem:[#allocation6 + $0xb0] sm:$0xff]
        %v551 = vld [vmem:[#allocation6 + $0xb8] sm:$0xff]
        %v552 = vld [vmem:[#allocation6 + $0xc0] sm:$0xff]
        %v553 = vld [vmem:[#allocation6 + $0xc8] sm:$0xff]
        %v554 = vld [vmem:[#allocation6 + $0xd0] sm:$0xff]
        %v555 = vld [vmem:[#allocation6 + $0xd8] sm:$0xff]
        %v556 = vld [vmem:[#allocation6 + $0xe0] sm:$0xff]
        %v557 = vld [vmem:[#allocation6 + $0xe8] sm:$0xff]
        %v558 = vld [vmem:[#allocation6 + $0xf0] sm:$0xff]
        %v559 = vld [vmem:[#allocation6 + $0xf8] sm:$0xff]
        %v560 = vld [vmem:[#allocation6 + $0x100] sm:$0xff]
        %v561 = vld [vmem:[#allocation6 + $0x108] sm:$0xff]
        %v562 = vld [vmem:[#allocation6 + $0x110] sm:$0xff]
        %v563 = vld [vmem:[#allocation6 + $0x118] sm:$0xff]
        %v564 = vld [vmem:[#allocation6 + $0x120] sm:$0xff]
        %v565 = vld [vmem:[#allocation6 + $0x128] sm:$0xff]
        %v566 = vld [vmem:[#allocation6 + $0x130] sm:$0xff]
        %v567 = vld [vmem:[#allocation6 + $0x138] sm:$0xff]
        %v568 = vld [vmem:[#allocation6 + $0x140] sm:$0xff]
        %v569 = vld [vmem:[#allocation6 + $0x148] sm:$0xff]
        %v570 = vld [vmem:[#allocation6 + $0x150] sm:$0xff]
        %v571 = vld [vmem:[#allocation6 + $0x158] sm:$0xff]
        %v572 = vld [vmem:[#allocation6 + $0x160] sm:$0xff]
        %v573 = vld [vmem:[#allocation6 + $0x168] sm:$0xff]
        %v574 = vld [vmem:[#allocation6 + $0x170] sm:$0xff]
        %v575 = vld [vmem:[#allocation6 + $0x178] sm:$0xff]
        %v576 = vld [vmem:[#allocation6 + $0x180] sm:$0xff]
        %v577 = vld [vmem:[#allocation6 + $0x188] sm:$0xff]
        %v578 = vld [vmem:[#allocation6 + $0x190] sm:$0xff]
        %v579 = vld [vmem:[#allocation6 + $0x198] sm:$0xff]
        %v580 = vld [vmem:[#allocation6 + $0x1a0] sm:$0xff]
        %v581 = vld [vmem:[#allocation6 + $0x1a8] sm:$0xff]
        %v582 = vld [vmem:[#allocation6 + $0x1b0] sm:$0xff]
        %v583 = vld [vmem:[#allocation6 + $0x1b8] sm:$0xff]
        %v584 = vld [vmem:[#allocation6 + $0x1c0] sm:$0xff]
        %v585 = vld [vmem:[#allocation6 + $0x1c8] sm:$0xff]
        %v586 = vld [vmem:[#allocation6 + $0x1d0] sm:$0xff]
        %v587 = vld [vmem:[#allocation6 + $0x1d8] sm:$0xff]
        %v588 = vld [vmem:[#allocation6 + $0x1e0] sm:$0xff]
        %v589 = vld [vmem:[#allocation6 + $0x1e8] sm:$0xff]
        %v590 = vld [vmem:[#allocation6 + $0x1f0] sm:$0xff]
        %v591 = vld [vmem:[#allocation6 + $0x1f8] sm:$0xff]
        %v592 = vld [vmem:[#allocation8] sm:$0xff]
        %v593 = vld [vmem:[#allocation8 + $0x8] sm:$0xff]
        %v594 = vld [vmem:[#allocation8 + $0x10] sm:$0xff]
        %v595 = vld [vmem:[#allocation8 + $0x18] sm:$0xff]
        %v596 = vld [vmem:[#allocation8 + $0x20] sm:$0xff]
        %v597 = vld [vmem:[#allocation8 + $0x28] sm:$0xff]
        %v598 = vld [vmem:[#allocation8 + $0x30] sm:$0xff]
        %v599 = vld [vmem:[#allocation8 + $0x38] sm:$0xff]
        %v600 = vld [vmem:[#allocation8 + $0x40] sm:$0xff]
        %v601 = vld [vmem:[#allocation8 + $0x48] sm:$0xff]
        %v602 = vld [vmem:[#allocation8 + $0x50] sm:$0xff]
        %v603 = vld [vmem:[#allocation8 + $0x58] sm:$0xff]
        %v604 = vld [vmem:[#allocation8 + $0x60] sm:$0xff]
        %v605 = vld [vmem:[#allocation8 + $0x68] sm:$0xff]
        %v606 = vld [vmem:[#allocation8 + $0x70] sm:$0xff]
        %v607 = vld [vmem:[#allocation8 + $0x78] sm:$0xff]
        %v608 = vld [vmem:[#allocation8 + $0x80] sm:$0xff]
        %v609 = vld [vmem:[#allocation8 + $0x88] sm:$0xff]
        %v610 = vld [vmem:[#allocation8 + $0x90] sm:$0xff]
        %v611 = vld [vmem:[#allocation8 + $0x98] sm:$0xff]
        %v612 = vld [vmem:[#allocation8 + $0xa0] sm:$0xff]
        %v613 = vld [vmem:[#allocation8 + $0xa8] sm:$0xff]
        %v614 = vld [vmem:[#allocation8 + $0xb0] sm:$0xff]
        %v615 = vld [vmem:[#allocation8 + $0xb8] sm:$0xff]
        %v616 = vld [vmem:[#allocation8 + $0xc0] sm:$0xff]
        %v617 = vld [vmem:[#allocation8 + $0xc8] sm:$0xff]
        %v618 = vld [vmem:[#allocation8 + $0xd0] sm:$0xff]
        %v619 = vld [vmem:[#allocation8 + $0xd8] sm:$0xff]
        %v620 = vld [vmem:[#allocation8 + $0xe0] sm:$0xff]
        %v621 = vld [vmem:[#allocation8 + $0xe8] sm:$0xff]
        %v622 = vld [vmem:[#allocation8 + $0xf0] sm:$0xff]
        %v623 = vld [vmem:[#allocation8 + $0xf8] sm:$0xff]
        %v624 = vld [vmem:[#allocation8 + $0x100] sm:$0xff]
        %v625 = vld [vmem:[#allocation8 + $0x108] sm:$0xff]
        %v626 = vld [vmem:[#allocation8 + $0x110] sm:$0xff]
        %v627 = vld [vmem:[#allocation8 + $0x118] sm:$0xff]
        %v628 = vld [vmem:[#allocation8 + $0x120] sm:$0xff]
        %v629 = vld [vmem:[#allocation8 + $0x128] sm:$0xff]
        %v630 = vld [vmem:[#allocation8 + $0x130] sm:$0xff]
        %v631 = vld [vmem:[#allocation8 + $0x138] sm:$0xff]
        %v632 = vld [vmem:[#allocation8 + $0x140] sm:$0xff]
        %v633 = vld [vmem:[#allocation8 + $0x148] sm:$0xff]
        %v634 = vld [vmem:[#allocation8 + $0x150] sm:$0xff]
        %v635 = vld [vmem:[#allocation8 + $0x158] sm:$0xff]
        %v636 = vld [vmem:[#allocation8 + $0x160] sm:$0xff]
        %v637 = vld [vmem:[#allocation8 + $0x168] sm:$0xff]
        %v638 = vld [vmem:[#allocation8 + $0x170] sm:$0xff]
        %v639 = vld [vmem:[#allocation8 + $0x178] sm:$0xff]
        %v640 = vld [vmem:[#allocation8 + $0x180] sm:$0xff]
        %v641 = vld [vmem:[#allocation8 + $0x188] sm:$0xff]
        %v642 = vld [vmem:[#allocation8 + $0x190] sm:$0xff]
        %v643 = vld [vmem:[#allocation8 + $0x198] sm:$0xff]
        %v644 = vld [vmem:[#allocation8 + $0x1a0] sm:$0xff]
        %v645 = vld [vmem:[#allocation8 + $0x1a8] sm:$0xff]
        %v646 = vld [vmem:[#allocation8 + $0x1b0] sm:$0xff]
        %v647 = vld [vmem:[#allocation8 + $0x1b8] sm:$0xff]
        %v648 = vld [vmem:[#allocation8 + $0x1c0] sm:$0xff]
        %v649 = vld [vmem:[#allocation8 + $0x1c8] sm:$0xff]
        %v650 = vld [vmem:[#allocation8 + $0x1d0] sm:$0xff]
        %v651 = vld [vmem:[#allocation8 + $0x1d8] sm:$0xff]
        %v652 = vld [vmem:[#allocation8 + $0x1e0] sm:$0xff]
        %v653 = vld [vmem:[#allocation8 + $0x1e8] sm:$0xff]
        %v654 = vld [vmem:[#allocation8 + $0x1f0] sm:$0xff]
        %v655 = vld [vmem:[#allocation8 + $0x1f8] sm:$0xff]
        %656 = vmatpush.msra.mxu0 %v622
        %657 = vmatpush.msra.mxu0 %v620
        %658 = vmatpush.msra.mxu0 %v618
        %659 = vmatpush.msra.mxu0 %v616
        %660 = vmatpush.msra.mxu0 %v614
        %661 = vmatpush.msra.mxu0 %v612
        %662 = vmatpush.msra.mxu0 %v610
        %663 = vmatpush.msra.mxu0 %v608
        %664 = vmatpush.msra.mxu0 %v606
        %665 = vmatpush.msra.mxu0 %v604
        %666 = vmatpush.msra.mxu0 %v602
        %667 = vmatpush.msra.mxu0 %v600
        %668 = vmatpush.msra.mxu0 %v598
        %669 = vmatpush.msra.mxu0 %v596
        %670 = vmatpush.msra.mxu0 %v594
        %671 = vmatpush.msra.mxu0 %v592
        %672 = vmatmul.f32.gmra.mxu0 %v518
        %v673 = vpop.f32.mrf.mxu0
        %v674 = vadd.f32 0.0, %v673
        %675 = vdwg.mxu0
        %676 = vmatpush.msra.mxu0 %v654
        %677 = vmatpush.msra.mxu0 %v652
        %678 = vmatpush.msra.mxu0 %v650
        %679 = vmatpush.msra.mxu0 %v648
        %680 = vmatpush.msra.mxu0 %v646
        %681 = vmatpush.msra.mxu0 %v644
        %682 = vmatpush.msra.mxu0 %v642
        %683 = vmatpush.msra.mxu0 %v640
        %684 = vmatpush.msra.mxu0 %v638
        %685 = vmatpush.msra.mxu0 %v636
        %686 = vmatpush.msra.mxu0 %v634
        %687 = vmatpush.msra.mxu0 %v632
        %688 = vmatpush.msra.mxu0 %v630
        %689 = vmatpush.msra.mxu0 %v628
        %690 = vmatpush.msra.mxu0 %v626
        %691 = vmatpush.msra.mxu0 %v624
        %692 = vmatmul.f32.gmra.mxu0 %v527
        %v693 = vpop.f32.mrf.mxu0
        %v694 = vadd.f32 %v674, %v693
        %695 = vdwg.mxu0
        %696 = vmatpush.msra.mxu0 %v623
        %697 = vmatpush.msra.mxu0 %v621
        %698 = vmatpush.msra.mxu0 %v619
        %699 = vmatpush.msra.mxu0 %v617
        %700 = vmatpush.msra.mxu0 %v615
        %701 = vmatpush.msra.mxu0 %v613
        %702 = vmatpush.msra.mxu0 %v611
        %703 = vmatpush.msra.mxu0 %v609
        %704 = vmatpush.msra.mxu0 %v607
        %705 = vmatpush.msra.mxu0 %v605
        %706 = vmatpush.msra.mxu0 %v603
        %707 = vmatpush.msra.mxu0 %v601
        %708 = vmatpush.msra.mxu0 %v599
        %709 = vmatpush.msra.mxu0 %v597
        %710 = vmatpush.msra.mxu0 %v595
        %711 = vmatpush.msra.mxu0 %v593
        %712 = vmatmul.f32.gmra.mxu0 %v518
        %v713 = vpop.f32.mrf.mxu0
        %v714 = vadd.f32 0.0, %v713
        %715 = vdwg.mxu0
        %716 = vmatpush.msra.mxu0 %v655
        %717 = vmatpush.msra.mxu0 %v653
        %718 = vmatpush.msra.mxu0 %v651
        %719 = vmatpush.msra.mxu0 %v649
        %720 = vmatpush.msra.mxu0 %v647
        %721 = vmatpush.msra.mxu0 %v645
        %722 = vmatpush.msra.mxu0 %v643
        %723 = vmatpush.msra.mxu0 %v641
        %724 = vmatpush.msra.mxu0 %v639
        %725 = vmatpush.msra.mxu0 %v637
        %726 = vmatpush.msra.mxu0 %v635
        %727 = vmatpush.msra.mxu0 %v633
        %728 = vmatpush.msra.mxu0 %v631
        %729 = vmatpush.msra.mxu0 %v629
        %730 = vmatpush.msra.mxu0 %v627
        %731 = vmatpush.msra.mxu0 %v625
        %732 = vmatmul.f32.gmra.mxu0 %v527
        %v733 = vpop.f32.mrf.mxu0
        %v734 = vadd.f32 %v714, %v733
        %735 = vdwg.mxu0
        %736 = vmatpush.msra.mxu0 %v558
        %737 = vmatpush.msra.mxu0 %v556
        %738 = vmatpush.msra.mxu0 %v554
        %739 = vmatpush.msra.mxu0 %v552
        %740 = vmatpush.msra.mxu0 %v550
        %741 = vmatpush.msra.mxu0 %v548
        %742 = vmatpush.msra.mxu0 %v546
        %743 = vmatpush.msra.mxu0 %v544
        %744 = vmatpush.msra.mxu0 %v542
        %745 = vmatpush.msra.mxu0 %v540
        %746 = vmatpush.msra.mxu0 %v538
        %747 = vmatpush.msra.mxu0 %v536
        %748 = vmatpush.msra.mxu0 %v534
        %749 = vmatpush.msra.mxu0 %v532
        %750 = vmatpush.msra.mxu0 %v530
        %751 = vmatpush.msra.mxu0 %v528
        %752 = vmatmul.f32.gmra.mxu0 %v508
        %v753 = vpop.f32.mrf.mxu0
        %v754 = vadd.f32 %v694, %v753
        %755 = vdwg.mxu0
        %756 = vmatpush.msra.mxu0 %v590
        %757 = vmatpush.msra.mxu0 %v588
        %758 = vmatpush.msra.mxu0 %v586
        %759 = vmatpush.msra.mxu0 %v584
        %760 = vmatpush.msra.mxu0 %v582
        %761 = vmatpush.msra.mxu0 %v580
        %762 = vmatpush.msra.mxu0 %v578
        %763 = vmatpush.msra.mxu0 %v576
        %764 = vmatpush.msra.mxu0 %v574
        %765 = vmatpush.msra.mxu0 %v572
        %766 = vmatpush.msra.mxu0 %v570
        %767 = vmatpush.msra.mxu0 %v568
        %768 = vmatpush.msra.mxu0 %v566
        %769 = vmatpush.msra.mxu0 %v564
        %770 = vmatpush.msra.mxu0 %v562
        %771 = vmatpush.msra.mxu0 %v560
        %772 = vmatmul.f32.gmra.mxu0 %v509
        %v773 = vpop.f32.mrf.mxu0
        %v774 = vadd.f32 %v754, %v773
        %775 = vdwg.mxu0
        %776 = vmatpush.msra.mxu0 %v559
        %777 = vmatpush.msra.mxu0 %v557
        %778 = vmatpush.msra.mxu0 %v555
        %779 = vmatpush.msra.mxu0 %v553
        %780 = vmatpush.msra.mxu0 %v551
        %781 = vmatpush.msra.mxu0 %v549
        %782 = vmatpush.msra.mxu0 %v547
        %783 = vmatpush.msra.mxu0 %v545
        %784 = vmatpush.msra.mxu0 %v543
        %785 = vmatpush.msra.mxu0 %v541
        %786 = vmatpush.msra.mxu0 %v539
        %787 = vmatpush.msra.mxu0 %v537
        %788 = vmatpush.msra.mxu0 %v535
        %789 = vmatpush.msra.mxu0 %v533
        %790 = vmatpush.msra.mxu0 %v531
        %791 = vmatpush.msra.mxu0 %v529
        %792 = vmatmul.f32.gmra.mxu0 %v508
        %v793 = vpop.f32.mrf.mxu0
        %v794 = vadd.f32 %v734, %v793
        %795 = vdwg.mxu0
        %796 = vmatpush.msra.mxu0 %v591
        %797 = vmatpush.msra.mxu0 %v589
        %798 = vmatpush.msra.mxu0 %v587
        %799 = vmatpush.msra.mxu0 %v585
        %800 = vmatpush.msra.mxu0 %v583
        %801 = vmatpush.msra.mxu0 %v581
        %802 = vmatpush.msra.mxu0 %v579
        %803 = vmatpush.msra.mxu0 %v577
        %804 = vmatpush.msra.mxu0 %v575
        %805 = vmatpush.msra.mxu0 %v573
        %806 = vmatpush.msra.mxu0 %v571
        %807 = vmatpush.msra.mxu0 %v569
        %808 = vmatpush.msra.mxu0 %v567
        %809 = vmatpush.msra.mxu0 %v565
        %810 = vmatpush.msra.mxu0 %v563
        %811 = vmatpush.msra.mxu0 %v561
        %812 = vmatmul.f32.gmra.mxu0 %v509
        %v813 = vpop.f32.mrf.mxu0
        %v814 = vadd.f32 %v794, %v813
        %815 = vdwg.mxu0
        %s816 = sld [smem:[#allocation2]]
        %v817 = vstv %s816
        %v818 = vadd.f32 %v774, %v817
        %v819 = vadd.f32 %v814, %v817
        %v820 = vxor.u32 %v818, 2147483648
        %v821 = vxor.u32 %v819, 2147483648
        %v822 = vmul.f32 %v820, 1.442695
        %v823 = vpow.pop %v822
        %v824 = vmul.f32 %v821, 1.442695
        %v825 = vpow.pop %v824
        %v826 = vadd.f32 %v823, 1.0
        %v827 = vadd.f32 %v825, 1.0
        %v828 = vrcp.pop %v826
        %v829 = vmul.f32 %v826, %v828
        %v830 = vsub.f32 1.0, %v829
        %v831 = vmul.f32 %v828, %v830
        %v832 = vadd.f32 %v828, %v831
        %vm833 = vweird.f32 %v826
        %vm834 = vweird.f32 %v828
        %vm835 = vmor %vm833, %vm834
        %v836 = vsel %vm835, %v828, %v832
        %v837 = vand.u32 2147483647, %v826
        %vm838 = vcmp.eq.f32.partialorder %v837, 8.507059e+37
        %v839 = vand.u32 %v826, 2147483648
        %v840 = vor.u32 1.1754944e-38, %v839
        %v841 = vsel %vm838, %v840, %v836
        %v842 = vmul.f32 1.0, %v841
        %v843 = vrcp.pop %v827
        %v844 = vmul.f32 %v827, %v843
        %v845 = vsub.f32 1.0, %v844
        %v846 = vmul.f32 %v843, %v845
        %v847 = vadd.f32 %v843, %v846
        %vm848 = vweird.f32 %v827
        %vm849 = vweird.f32 %v843
        %vm850 = vmor %vm848, %vm849
        %v851 = vsel %vm850, %v843, %v847
        %v852 = vand.u32 2147483647, %v827
        %vm853 = vcmp.eq.f32.partialorder %v852, 8.507059e+37
        %v854 = vand.u32 %v827, 2147483648
        %v855 = vor.u32 1.1754944e-38, %v854
        %v856 = vsel %vm853, %v855, %v851
        %v857 = vmul.f32 1.0, %v856
        %v858 = vperm.slane %v842, 0
        %v859 = vperm.slane %v857, 0
        %v860 = vmul.f32 %v482, %v858
        %v861 = vmul.f32 %v483, %v859
        %v862 = vmul.f32 %v484, %v858
        %v863 = vmul.f32 %v485, %v859
        %v864 = vmul.f32 %v486, %v858
        %v865 = vmul.f32 %v487, %v859
        %v866 = vmul.f32 %v488, %v858
        %v867 = vmul.f32 %v489, %v859
        %868 = vst [vmem:[%s305] sm:$0xff] %v860
        %869 = vst [vmem:[%s305 + $0x8] sm:$0xff] %v861
        %870 = vst [vmem:[%s305 + $0x10] sm:$0xff] %v862
        %871 = vst [vmem:[%s305 + $0x18] sm:$0xff] %v863
        %872 = vst [vmem:[%s305 + $0x20] sm:$0xff] %v864
        %873 = vst [vmem:[%s305 + $0x28] sm:$0xff] %v865
        %874 = vst [vmem:[%s305 + $0x30] sm:$0xff] %v866
        %875 = vst [vmem:[%s305 + $0x38] sm:$0xff] %v867
        %s876 = sand.u32 %s164, 1
        %s877 = scalar_lea.sflag [#allocation5], %s876
        %s878 = sand.u32 %s164, 1
        %s879 = smul.addr %s878, 64
        %s880 = scalar_lea.vmem [#allocation9], %s879
        // Predicated region
        $region57: #{tpu_custom_call.1} parent=43 // pred_check
          %p881 = pneg %p174
        $region58: #{tpu_custom_call.1} parent=43 // pred_check_branch
          %883 = sbr.rel (%p881) target = $region60
        $region59: #{tpu_custom_call.1} parent=43 // pred_region
          %885 = vsyncadd %s877, 0
          %s886 = smul.addr %s25, 8
          %s887 = smul.addr %s886, 8
          %s888 = scalar_lea.hbm %s6, %s887
          %s889 = sshll.u32 %s880, 4
          %s890 = int_to_ptr.vmem [resolvable:$true] %s889
          %s891 = sshll.u32 %s888, 4
          %s892 = int_to_ptr.hbm [resolvable:$true] %s891
          %897 = dma.vmem_to_hbm [thread:$0]  %s890, 1024, %s892, %s877, 256, 256, 16
        $region60: #{tpu_custom_call.1} parent=43 // pred_fallthru
          _
      $region44: #{tpu_custom_call.1} parent=5 // pred_fallthru
        _
      %p898 = scmp.le.s32.totalorder 2, %s20
      // Predicated region
      $region61: #{tpu_custom_call.1} parent=5 // pred_check
        %p899 = pneg %p898
      $region62: #{tpu_custom_call.1} parent=5 // pred_check_branch
        %901 = sbr.rel (%p899) target = $region64
      $region63: #{tpu_custom_call.1} parent=5 // pred_region
        %s902 = ssub.s32 %s20, 2
        // Predicated region
        $region65: #{tpu_custom_call.1} parent=63 // pred_check
          %p903 = pneg %p180
        $region66: #{tpu_custom_call.1} parent=63 // pred_check_branch
          %905 = sbr.rel (%p903) target = $region68
        $region67: #{tpu_custom_call.1} parent=63 // pred_region
          %s906 = sand.u32 %s165, 1
          %s907 = scalar_lea.sflag [#allocation5], %s906
          %s908 = sand.u32 %s165, 1
          %s909 = smul.addr %s908, 64
          %s910 = scalar_lea.vmem [#allocation9], %s909
          %912 = dma.done %s907, 1024
        $region68: #{tpu_custom_call.1} parent=63 // pred_fallthru
          _
      $region64: #{tpu_custom_call.1} parent=5 // pred_fallthru
        _
    $region6: #{tpu_custom_call.1} parent=1 // loop_footer
      %s24 = sadd.s32 1, %s20
    $region7: #{tpu_custom_call.1} parent=1 // loop_footer_branch
      %19 = sbr.rel target = $region3
    $region8: #{tpu_custom_call.1} parent=1 // loop_exit
      _
    %913 = vsyncpa [#allocation4], 1
    %s914 = scalar_lea.sflag [#allocation4], 1
    %915 = vsyncpa %s914, 1
    %916 = vsyncpa [#allocation7], 1
    %917 = vsyncpa [#allocation5], 1
    %s918 = scalar_lea.sflag [#allocation5], 1
    %919 = vsyncpa %s918, 1

</llo_original>
